<compile_context>
chip_gen: v7x
topology: tpu7x:2x2x1
jax: 0.10.0
libtpu: 0.0.40
codegen_flags: <defaults>
</compile_context>

<pallas_src>
import functools

import jax
import jax.numpy as jnp
from jax import lax
from jax.experimental import pallas as pl
from jax.experimental.pallas import tpu as pltpu


def _round_up(x, m):
    return (x + m - 1) // m * m


def _atloss_kernel(x_ref, mask_ref, w9_ref, pp_ref, loss_ref, stacked_ref, *,
                   CS, CinP, COp, W, E, count, eps):
    Wp = W + 2
    x = x_ref[...]          # (CinP, E): rows [0,CS) student, [CS,CS+CT) teacher
    mask = mask_ref[...]    # (1, E): 1.0 at pool-anchor lanes, 0 elsewhere
    pp = pp_ref[...]        # (3*COp, 1): conv bias | BN gamma | BN beta

    # Build the 9-tap stacked LHS (9*CinP, E): tap k = 3*dy + dx occupies
    # sublane rows [k*CinP, (k+1)*CinP), lane-rolled (XLU) so that lane e
    # holds the value of the (dy, dx) conv-tap neighbour of position e.
    for k in range(9):
        dy, dx = divmod(k, 3)
        d = (dy - 1) * Wp + (dx - 1)
        shifted = x if d == 0 else pltpu.roll(x, shift=(-d) % E, axis=1)
        stacked_ref[k * CinP:(k + 1) * CinP, :] = shifted

    # 3x3 conv (padding=1), student+teacher fused via block-diagonal weights,
    # all 9 taps fused into a single deep MXU matmul with K = 9*CinP.
    conv = jnp.dot(w9_ref[...], stacked_ref[...],
                   preferred_element_type=jnp.float32)
    conv = conv + pp[0:COp, :]                       # conv bias

    # 2x2 / stride-2 max pool: at each anchor lane take the max over the conv
    # values at lane offsets {0, 1, W+2, W+3}.
    pooled = conv
    for delta in (1, Wp, Wp + 1):
        pooled = jnp.maximum(pooled,
                             pltpu.roll(conv, shift=(E - delta) % E, axis=1))

    # BatchNorm2d (training mode): masked batch statistics, one-pass variance.
    pm = pooled * mask
    s1 = jnp.sum(pm, axis=1, keepdims=True)
    s2 = jnp.sum(pm * pooled, axis=1, keepdims=True)
    mean = s1 / count
    var = jnp.maximum(s2 / count - mean * mean, 0.0)
    y = (pooled - mean) * lax.rsqrt(var + eps)
    y = pp[COp:2 * COp, :] * y + pp[2 * COp:3 * COp, :]

    # sigmoid on the EUP (exact identity: sigmoid(y) = 0.5*tanh(y/2) + 0.5).
    sig = 0.5 * jnp.tanh(0.5 * y) + 0.5

    # SmoothL1Loss (beta=1, reduction='mean') between student and teacher rows.
    diff = sig[0:CS, :] - sig[CS:2 * CS, :]
    ad = jnp.abs(diff)
    elem = jnp.where(ad < 1.0, 0.5 * diff * diff, ad - 0.5)
    loss_ref[0, 0] = jnp.sum(elem * mask) / (count * CS)


def _to_rows(x_nchw):
    # NCHW -> zero-pad spatial by 1 -> (C, N*(H+2)*(W+2)) channels-in-sublanes.
    n, c, h, w = x_nchw.shape
    xp = jnp.pad(x_nchw, ((0, 0), (0, 0), (1, 1), (1, 1)))
    return jnp.transpose(xp, (1, 0, 2, 3)).reshape(c, n * (h + 2) * (w + 2))


def _pool_anchor_mask(n, h, w, e):
    # 1.0 at flattened padded-coordinate lanes (h', w') with h', w' odd and
    # <= H-1 / W-1 (i.e. pool outputs at even conv h and even conv w).
    hp = jnp.arange(h + 2)
    wp = jnp.arange(w + 2)
    mh = (hp % 2 == 1) & (hp <= h - 1)
    mw = (wp % 2 == 1) & (wp <= w - 1)
    m = (mh[:, None] & mw[None, :]).astype(jnp.float32)          # (H+2, W+2)
    m = jnp.broadcast_to(m[None], (n, h + 2, w + 2)).reshape(1, -1)
    return jnp.pad(m, ((0, 0), (0, e - m.shape[1])))


def at_loss(x_student_dep, x_student_img, x_teacher_dep, x_teacher_img, params,
            *, lane_multiple=256):
    n, cs, h, w = x_student_dep.shape
    ct = x_teacher_dep.shape[1]

    L = n * (h + 2) * (w + 2)              # flattened zero-padded positions
    E = _round_up(L, lane_multiple)        # lane-dense (use 128 on v5e)
    cin = cs + ct
    cinp = _round_up(cin, 8)               # fused input channels, sublane-aligned
    cop = _round_up(2 * cs, 8)             # fused output channels, sublane-aligned

    # Fuse dep+img in the wrapper (XLA folds the add into the layout transform)
    # and stack student/teacher along the channel (sublane) axis.
    xs = _to_rows(x_student_dep + x_student_img)      # (CS, L)
    xt = _to_rows(x_teacher_dep + x_teacher_img)      # (CT, L)
    x = jnp.pad(jnp.concatenate([xs, xt], axis=0),
                ((0, cinp - cin), (0, E - L)))        # (CinP, E)

    maskf = _pool_anchor_mask(n, h, w, E)             # (1, E)

    # Block-diagonal fused conv weights, lane-dense layout (COp, 9*CinP):
    # column k*CinP + i multiplies row i of the stacked tap-k block.
    w9_3d = jnp.zeros((9, cop, cinp), jnp.float32)
    w9_3d = w9_3d.at[:, :cs, :cs].set(
        jnp.transpose(params["ws"], (2, 3, 0, 1)).reshape(9, cs, cs))
    w9_3d = w9_3d.at[:, cs:2 * cs, cs:cs + ct].set(
        jnp.transpose(params["wt"], (2, 3, 0, 1)).reshape(9, cs, ct))
    w9 = jnp.transpose(w9_3d, (1, 0, 2)).reshape(cop, 9 * cinp)

    # Packed per-channel params: rows [0,COp) conv bias, [COp,2COp) BN gamma,
    # [2COp,3COp) BN beta; student channels first, then teacher channels.
    def col(a, b):
        return jnp.pad(jnp.concatenate([a, b]), (0, cop - 2 * cs))
    pp = jnp.concatenate([col(params["bs"], params["bt"]),
                          col(params["gs"], params["gt"]),
                          col(params["bes"], params["bet"])]).reshape(3 * cop, 1)
    pp = pp.astype(jnp.float32)

    count = float(n * (h // 2) * (w // 2))            # pooled positions/channel

    # Scoped-VMEM budget: x + stacked-tap scratch + epilogue live set (+2x
    # headroom), floor at 32 MiB so small problems keep the platform default.
    vmem_need = 4 * (cinp * E                # x
                     + 9 * cinp * E          # stacked conv LHS scratch
                     + 8 * cop * E           # conv / pooled / BN / sigmoid
                     + cop * _round_up(9 * cinp, 128)
                     + 4 * E)
    vmem_limit = int(min(max(2 * vmem_need, 32 * 1024 * 1024),
                         120 * 1024 * 1024))

    kernel = functools.partial(_atloss_kernel, CS=cs, CinP=cinp, COp=cop,
                               W=w, E=E, count=count, eps=1e-5)
    loss = pl.pallas_call(
        kernel,
        out_shape=jax.ShapeDtypeStruct((1, 1), jnp.float32),
        in_specs=[pl.BlockSpec(memory_space=pltpu.MemorySpace.VMEM)] * 4,
        out_specs=pl.BlockSpec(memory_space=pltpu.MemorySpace.SMEM),
        scratch_shapes=[pltpu.VMEM((9 * cinp, E), jnp.float32)],
        compiler_params=pltpu.CompilerParams(vmem_limit_bytes=vmem_limit),
    )(x, maskf, w9, pp)
    return loss[0, 0]


def reference_loss(x_student_dep, x_student_img, x_teacher_dep, x_teacher_img,
                   params, eps=1e-5):
    # Pure-JAX (XLA) reference of the PyTorch forward, used as a sanity check.
    def branch(x, wgt, b, gamma, beta):
        y = lax.conv_general_dilated(
            x, wgt, (1, 1), ((1, 1), (1, 1)),
            dimension_numbers=("NCHW", "OIHW", "NCHW"))
        y = y + b[None, :, None, None]
        y = lax.reduce_window(y, -jnp.inf, lax.max,
                              (1, 1, 2, 2), (1, 1, 2, 2), "VALID")
        mean = jnp.mean(y, axis=(0, 2, 3), keepdims=True)
        var = jnp.mean((y - mean) ** 2, axis=(0, 2, 3), keepdims=True)
        y = (y - mean) * lax.rsqrt(var + eps)
        y = y * gamma[None, :, None, None] + beta[None, :, None, None]
        return jax.nn.sigmoid(y)

    s = branch(x_student_dep + x_student_img,
               params["ws"], params["bs"], params["gs"], params["bes"])
    t = branch(x_teacher_dep + x_teacher_img,
               params["wt"], params["bt"], params["gt"], params["bet"])
    d = s - t
    ad = jnp.abs(d)
    return jnp.mean(jnp.where(ad < 1.0, 0.5 * d * d, ad - 0.5))


if __name__ == "__main__":
    key = jax.random.PRNGKey(0)
    ks = jax.random.split(key, 12)
    N, CS, CT, H, W = 2, 4, 8, 16, 16

    x_student_dep = jax.random.normal(ks[0], (N, CS, H, W), jnp.float32)
    x_student_img = jax.random.normal(ks[1], (N, CS, H, W), jnp.float32)
    x_teacher_dep = jax.random.normal(ks[2], (N, CT, H, W), jnp.float32)
    x_teacher_img = jax.random.normal(ks[3], (N, CT, H, W), jnp.float32)

    params = {
        # studentconvs: Conv2d(CS -> CS, 3x3), BatchNorm2d(CS)
        "ws": 0.2 * jax.random.normal(ks[4], (CS, CS, 3, 3), jnp.float32),
        "bs": 0.1 * jax.random.normal(ks[5], (CS,), jnp.float32),
        "gs": 1.0 + 0.1 * jax.random.normal(ks[8], (CS,), jnp.float32),
        "bes": 0.1 * jax.random.normal(ks[9], (CS,), jnp.float32),
        # teacherconvs: Conv2d(CT -> CS, 3x3), BatchNorm2d(CS)
        "wt": 0.2 * jax.random.normal(ks[6], (CS, CT, 3, 3), jnp.float32),
        "bt": 0.1 * jax.random.normal(ks[7], (CS,), jnp.float32),
        "gt": 1.0 + 0.1 * jax.random.normal(ks[10], (CS,), jnp.float32),
        "bet": 0.1 * jax.random.normal(ks[11], (CS,), jnp.float32),
    }

    loss = jax.block_until_ready(
        jax.jit(at_loss)(x_student_dep, x_student_img,
                         x_teacher_dep, x_teacher_img, params))
    ref = jax.block_until_ready(
        reference_loss(x_student_dep, x_student_img,
                       x_teacher_dep, x_teacher_img, params))

    assert bool(jnp.isfinite(loss)), "kernel produced a non-finite loss"
    assert abs(float(loss) - float(ref)) <= 1e-4 + 1e-3 * abs(float(ref)), \
        (float(loss), float(ref))
    print("KERNEL_OK")
</pallas_src>

<mosaic_0001>
module attributes {stable_mosaic.version = 11 : i64} {
  func.func @_atloss_kernel(%arg0: memref<16x768xf32, #tpu.memory_space<vmem>>, %arg1: memref<1x768xf32, #tpu.memory_space<vmem>>, %arg2: memref<8x144xf32, #tpu.memory_space<vmem>>, %arg3: memref<24x1xf32, #tpu.memory_space<vmem>>, %arg4: memref<1x1xf32, #tpu.memory_space<smem>>, %arg5: memref<144x768xf32, #tpu.memory_space<vmem>>) attributes {dimension_semantics = [], scalar_prefetch = 0 : i64, scratch_operands = 1 : i64, tpu.core_type = #tpu.core_type<tc>} {
    %c0 = arith.constant 0 : index
    %c0_0 = arith.constant 0 : index
    %0 = vector.load %arg0[%c0, %c0_0] : memref<16x768xf32, #tpu.memory_space<vmem>>, vector<16x768xf32>
    %c0_1 = arith.constant 0 : index
    %c0_2 = arith.constant 0 : index
    %1 = vector.load %arg1[%c0_1, %c0_2] : memref<1x768xf32, #tpu.memory_space<vmem>>, vector<1x768xf32>
    %c0_3 = arith.constant 0 : index
    %c0_4 = arith.constant 0 : index
    %2 = vector.load %arg3[%c0_3, %c0_4] : memref<24x1xf32, #tpu.memory_space<vmem>>, vector<24x1xf32>
    %c19_i32 = arith.constant 19 : i32
    %3 = tpu.dynamic_rotate %0 by %c19_i32 dim 1 : vector<16x768xf32>, i32 -> vector<16x768xf32>
    %c0_5 = arith.constant 0 : index
    %c0_6 = arith.constant 0 : index
    %4 = vector.load %arg5[%c0_5, %c0_6] : memref<144x768xf32, #tpu.memory_space<vmem>>, vector<16x768xf32>
    tpu.vector_store %arg5[%c0_5, %c0_6], %3 {strides = array<i32>} : memref<144x768xf32, #tpu.memory_space<vmem>>, vector<16x768xf32>,
    %c18_i32 = arith.constant 18 : i32
    %5 = tpu.dynamic_rotate %0 by %c18_i32 dim 1 : vector<16x768xf32>, i32 -> vector<16x768xf32>
    %c16 = arith.constant 16 : index
    %c0_7 = arith.constant 0 : index
    %6 = vector.load %arg5[%c16, %c0_7] : memref<144x768xf32, #tpu.memory_space<vmem>>, vector<16x768xf32>
    tpu.vector_store %arg5[%c16, %c0_7], %5 {strides = array<i32>} : memref<144x768xf32, #tpu.memory_space<vmem>>, vector<16x768xf32>,
    %c17_i32 = arith.constant 17 : i32
    %7 = tpu.dynamic_rotate %0 by %c17_i32 dim 1 : vector<16x768xf32>, i32 -> vector<16x768xf32>
    %c32 = arith.constant 32 : index
    %c0_8 = arith.constant 0 : index
    %8 = vector.load %arg5[%c32, %c0_8] : memref<144x768xf32, #tpu.memory_space<vmem>>, vector<16x768xf32>
    tpu.vector_store %arg5[%c32, %c0_8], %7 {strides = array<i32>} : memref<144x768xf32, #tpu.memory_space<vmem>>, vector<16x768xf32>,
    %c1_i32 = arith.constant 1 : i32
    %9 = tpu.dynamic_rotate %0 by %c1_i32 dim 1 : vector<16x768xf32>, i32 -> vector<16x768xf32>
    %c48 = arith.constant 48 : index
    %c0_9 = arith.constant 0 : index
    %10 = vector.load %arg5[%c48, %c0_9] : memref<144x768xf32, #tpu.memory_space<vmem>>, vector<16x768xf32>
    tpu.vector_store %arg5[%c48, %c0_9], %9 {strides = array<i32>} : memref<144x768xf32, #tpu.memory_space<vmem>>, vector<16x768xf32>,
    %c64 = arith.constant 64 : index
    %c0_10 = arith.constant 0 : index
    %11 = vector.load %arg5[%c64, %c0_10] : memref<144x768xf32, #tpu.memory_space<vmem>>, vector<16x768xf32>
    tpu.vector_store %arg5[%c64, %c0_10], %0 {strides = array<i32>} : memref<144x768xf32, #tpu.memory_space<vmem>>, vector<16x768xf32>,
    %c767_i32 = arith.constant 767 : i32
    %12 = tpu.dynamic_rotate %0 by %c767_i32 dim 1 : vector<16x768xf32>, i32 -> vector<16x768xf32>
    %c80 = arith.constant 80 : index
    %c0_11 = arith.constant 0 : index
    %13 = vector.load %arg5[%c80, %c0_11] : memref<144x768xf32, #tpu.memory_space<vmem>>, vector<16x768xf32>
    tpu.vector_store %arg5[%c80, %c0_11], %12 {strides = array<i32>} : memref<144x768xf32, #tpu.memory_space<vmem>>, vector<16x768xf32>,
    %c751_i32 = arith.constant 751 : i32
    %14 = tpu.dynamic_rotate %0 by %c751_i32 dim 1 : vector<16x768xf32>, i32 -> vector<16x768xf32>
    %c96 = arith.constant 96 : index
    %c0_12 = arith.constant 0 : index
    %15 = vector.load %arg5[%c96, %c0_12] : memref<144x768xf32, #tpu.memory_space<vmem>>, vector<16x768xf32>
    tpu.vector_store %arg5[%c96, %c0_12], %14 {strides = array<i32>} : memref<144x768xf32, #tpu.memory_space<vmem>>, vector<16x768xf32>,
    %c750_i32 = arith.constant 750 : i32
    %16 = tpu.dynamic_rotate %0 by %c750_i32 dim 1 : vector<16x768xf32>, i32 -> vector<16x768xf32>
    %c112 = arith.constant 112 : index
    %c0_13 = arith.constant 0 : index
    %17 = vector.load %arg5[%c112, %c0_13] : memref<144x768xf32, #tpu.memory_space<vmem>>, vector<16x768xf32>
    tpu.vector_store %arg5[%c112, %c0_13], %16 {strides = array<i32>} : memref<144x768xf32, #tpu.memory_space<vmem>>, vector<16x768xf32>,
    %c749_i32 = arith.constant 749 : i32
    %18 = tpu.dynamic_rotate %0 by %c749_i32 dim 1 : vector<16x768xf32>, i32 -> vector<16x768xf32>
    %c128 = arith.constant 128 : index
    %c0_14 = arith.constant 0 : index
    %19 = vector.load %arg5[%c128, %c0_14] : memref<144x768xf32, #tpu.memory_space<vmem>>, vector<16x768xf32>
    tpu.vector_store %arg5[%c128, %c0_14], %18 {strides = array<i32>} : memref<144x768xf32, #tpu.memory_space<vmem>>, vector<16x768xf32>,
    %c0_15 = arith.constant 0 : index
    %c0_16 = arith.constant 0 : index
    %20 = vector.load %arg2[%c0_15, %c0_16] : memref<8x144xf32, #tpu.memory_space<vmem>>, vector<8x144xf32>
    %c0_17 = arith.constant 0 : index
    %c0_18 = arith.constant 0 : index
    %21 = vector.load %arg5[%c0_17, %c0_18] : memref<144x768xf32, #tpu.memory_space<vmem>>, vector<144x768xf32>
    %cst = arith.constant dense<0.000000e+00> : vector<8x768xf32>
    %22 = tpu.matmul %20, %21, %cst {dimension_numbers = #tpu.dot_dimension_numbers<[1], [0], [0], [1], [0, 0, 1, 1], [], []>} : vector<8x144xf32>, vector<144x768xf32>, vector<8x768xf32> -> vector<8x768xf32>
    %23 = vector.extract_strided_slice %2 {offsets = [0, 0], sizes = [8, 1], strides = [1, 1]} : vector<24x1xf32> to vector<8x1xf32>
    %24 = vector.broadcast %23 : vector<8x1xf32> to vector<8x768xf32>
    %25 = arith.addf %22, %24 : vector<8x768xf32>
    %c767_i32_19 = arith.constant 767 : i32
    %26 = tpu.dynamic_rotate %25 by %c767_i32_19 dim 1 : vector<8x768xf32>, i32 -> vector<8x768xf32>
    %27 = arith.maximumf %25, %26 : vector<8x768xf32>
    %c750_i32_20 = arith.constant 750 : i32
    %28 = tpu.dynamic_rotate %25 by %c750_i32_20 dim 1 : vector<8x768xf32>, i32 -> vector<8x768xf32>
    %29 = arith.maximumf %27, %28 : vector<8x768xf32>
    %c749_i32_21 = arith.constant 749 : i32
    %30 = tpu.dynamic_rotate %25 by %c749_i32_21 dim 1 : vector<8x768xf32>, i32 -> vector<8x768xf32>
    %31 = arith.maximumf %29, %30 : vector<8x768xf32>
    %32 = vector.broadcast %1 : vector<1x768xf32> to vector<8x768xf32>
    %33 = arith.mulf %31, %32 : vector<8x768xf32>
    %cst_22 = arith.constant dense<0.000000e+00> : vector<8xf32>
    %34 = vector.multi_reduction <add>, %33, %cst_22 [1] : vector<8x768xf32> to vector<8xf32>
    %35 = vector.shape_cast %34 : vector<8xf32> to vector<8x1xf32>
    %36 = arith.mulf %33, %31 : vector<8x768xf32>
    %cst_23 = arith.constant dense<0.000000e+00> : vector<8xf32>
    %37 = vector.multi_reduction <add>, %36, %cst_23 [1] : vector<8x768xf32> to vector<8xf32>
    %38 = vector.shape_cast %37 : vector<8xf32> to vector<8x1xf32>
    %cst_24 = arith.constant 1.280000e+02 : f32
    %39 = vector.broadcast %cst_24 : f32 to vector<8x1xf32>
    %40 = arith.divf %35, %39 : vector<8x1xf32>
    %cst_25 = arith.constant 1.280000e+02 : f32
    %41 = vector.broadcast %cst_25 : f32 to vector<8x1xf32>
    %42 = arith.divf %38, %41 : vector<8x1xf32>
    %43 = arith.mulf %40, %40 : vector<8x1xf32>
    %44 = arith.subf %42, %43 : vector<8x1xf32>
    %cst_26 = arith.constant 0.000000e+00 : f32
    %45 = vector.broadcast %cst_26 : f32 to vector<8x1xf32>
    %46 = arith.maximumf %44, %45 : vector<8x1xf32>
    %47 = vector.broadcast %40 : vector<8x1xf32> to vector<8x768xf32>
    %48 = arith.subf %31, %47 : vector<8x768xf32>
    %cst_27 = arith.constant 9.99999974E-6 : f32
    %49 = vector.broadcast %cst_27 : f32 to vector<8x1xf32>
    %50 = arith.addf %46, %49 : vector<8x1xf32>
    %51 = math.rsqrt %50 : vector<8x1xf32>
    %52 = vector.broadcast %51 : vector<8x1xf32> to vector<8x768xf32>
    %53 = arith.mulf %48, %52 : vector<8x768xf32>
    %54 = vector.extract_strided_slice %2 {offsets = [8, 0], sizes = [8, 1], strides = [1, 1]} : vector<24x1xf32> to vector<8x1xf32>
    %55 = vector.broadcast %54 : vector<8x1xf32> to vector<8x768xf32>
    %56 = arith.mulf %55, %53 : vector<8x768xf32>
    %57 = vector.extract_strided_slice %2 {offsets = [16, 0], sizes = [8, 1], strides = [1, 1]} : vector<24x1xf32> to vector<8x1xf32>
    %58 = vector.broadcast %57 : vector<8x1xf32> to vector<8x768xf32>
    %59 = arith.addf %56, %58 : vector<8x768xf32>
    %cst_28 = arith.constant 5.000000e-01 : f32
    %60 = vector.broadcast %cst_28 : f32 to vector<8x768xf32>
    %61 = arith.mulf %60, %59 : vector<8x768xf32>
    %62 = math.tanh %61 : vector<8x768xf32>
    %cst_29 = arith.constant 5.000000e-01 : f32
    %63 = vector.broadcast %cst_29 : f32 to vector<8x768xf32>
    %64 = arith.mulf %63, %62 : vector<8x768xf32>
    %cst_30 = arith.constant 5.000000e-01 : f32
    %65 = vector.broadcast %cst_30 : f32 to vector<8x768xf32>
    %66 = arith.addf %64, %65 : vector<8x768xf32>
    %67 = vector.extract_strided_slice %66 {offsets = [0, 0], sizes = [4, 768], strides = [1, 1]} : vector<8x768xf32> to vector<4x768xf32>
    %68 = vector.extract_strided_slice %66 {offsets = [4, 0], sizes = [4, 768], strides = [1, 1]} : vector<8x768xf32> to vector<4x768xf32>
    %69 = arith.subf %67, %68 : vector<4x768xf32>
    %70 = math.absf %69 : vector<4x768xf32>
    %cst_31 = arith.constant 1.000000e+00 : f32
    %71 = vector.broadcast %cst_31 : f32 to vector<4x768xf32>
    %72 = arith.cmpf olt, %70, %71 : vector<4x768xf32>
    %cst_32 = arith.constant 5.000000e-01 : f32
    %73 = vector.broadcast %cst_32 : f32 to vector<4x768xf32>
    %74 = arith.mulf %73, %69 : vector<4x768xf32>
    %75 = arith.mulf %74, %69 : vector<4x768xf32>
    %cst_33 = arith.constant 5.000000e-01 : f32
    %76 = vector.broadcast %cst_33 : f32 to vector<4x768xf32>
    %77 = arith.subf %70, %76 : vector<4x768xf32>
    %78 = arith.select %72, %75, %77 : vector<4x768xi1>, vector<4x768xf32>
    %79 = vector.broadcast %1 : vector<1x768xf32> to vector<4x768xf32>
    %80 = arith.mulf %78, %79 : vector<4x768xf32>
    %81 = vector.shape_cast %80 : vector<4x768xf32> to vector<1x4x768xf32>
    %cst_34 = arith.constant dense<0.000000e+00> : vector<1xf32>
    %82 = vector.multi_reduction <add>, %81, %cst_34 [1, 2] : vector<1x4x768xf32> to vector<1xf32>
    %83 = vector.shape_cast %82 : vector<1xf32> to vector<1x1x1xf32>
    %84 = vector.extract %83[0, 0, 0] : f32 from vector<1x1x1xf32>
    %cst_35 = arith.constant 5.120000e+02 : f32
    %85 = arith.divf %84, %cst_35 : f32
    %c0_36 = arith.constant 0 : index
    %c0_37 = arith.constant 0 : index
    %86 = memref.load %arg4[%c0_36, %c0_37] : memref<1x1xf32, #tpu.memory_space<smem>>
    memref.store %85, %arg4[%c0_36, %c0_37] : memref<1x1xf32, #tpu.memory_space<smem>>
    return
  }
}

</mosaic_0001>

<llo_original>
// kernel: at_loss.1
$region0: #{at_loss.1}
  #allocation0 [shape = 'u32[]', space=smem, size = 0x4, offset = 0x4, fixed_abs, tag = 'smem constant byte address 0x4 - core index']
  #allocation1 [shape = 'u32[144,128]{1,0:T(1,128)}', space=vmem, size = 0x12000, scoped, tag = 'internal scratch']
  #allocation2 [shape = 'f32[144,768]{1,0:T(8,128)}', space=vmem, size = 0x6c000, scoped, tag = 'scratch operand']
  %s0 = inlined_call_operand.vmem [shape: f32[16,768], index: 0, kind: input, shape index: {}]
  %s1 = inlined_call_operand.vmem [shape: f32[1,768], index: 1, kind: input, shape index: {}]
  %s2 = inlined_call_operand.vmem [shape: f32[8,144], index: 2, kind: input, shape index: {}]
  %s3 = inlined_call_operand.vmem [shape: f32[24,1], index: 3, kind: input, shape index: {}]
  %s4 = inlined_call_operand.hbm [shape: f32[1,1], index: 4, kind: output, shape index: {}]
  %s5 = sld [smem:[#allocation0]]
  $region26: #{at_loss.1} parent=0
    _
  %s7 = ssub.s32 1, %s5
  %s8 = scalar_select 0, %s7, %s5
  $region1: #{at_loss.1} parent=0
    #allocation3 [shape = 'u8[512]{0}', space=smem, size = 0x200, scoped, tag = 'output window, operand 0, single buffered']
    #allocation4 [shape = 's32[1]{0}', space=sflag, size = 0x4, scoped, tag = 'scoped memory for at_loss.1']
    %9 = vsyncpa [#allocation4], 0
    // Predicated region
    $region2: #{at_loss.1} parent=1 // pred_check
      _
    $region3: #{at_loss.1} parent=1 // pred_check_branch
      %11 = sbr.rel (0) target = $region5
    $region4: #{at_loss.1} parent=1 // pred_region
      _
    $region5: #{at_loss.1} parent=1 // pred_fallthru
      _
    // Predicated region
    $region6: #{at_loss.1} parent=1 // pred_check
      _
    $region7: #{at_loss.1} parent=1 // pred_check_branch
      %13 = sbr.rel (0) target = $region9
    $region8: #{at_loss.1} parent=1 // pred_region
      _
    $region9: #{at_loss.1} parent=1 // pred_fallthru
      _
    // Predicated region
    $region10: #{at_loss.1} parent=1 // pred_check
      _
    $region11: #{at_loss.1} parent=1 // pred_check_branch
      %15 = sbr.rel (0) target = $region13
    $region12: #{at_loss.1} parent=1 // pred_region
      _
    $region13: #{at_loss.1} parent=1 // pred_fallthru
      _
    // Predicated region
    $region14: #{at_loss.1} parent=1 // pred_check
      _
    $region15: #{at_loss.1} parent=1 // pred_check_branch
      %17 = sbr.rel (0) target = $region17
    $region16: #{at_loss.1} parent=1 // pred_region
      _
    $region17: #{at_loss.1} parent=1 // pred_fallthru
      _
    %v18 = vld [vmem:[%s0] sm:$0xff]
    %v19 = vld [vmem:[%s0 + $0x8] sm:$0xff]
    %v20 = vld [vmem:[%s0 + $0x10] sm:$0xff]
    %v21 = vld [vmem:[%s0 + $0x18] sm:$0xff]
    %v22 = vld [vmem:[%s0 + $0x20] sm:$0xff]
    %v23 = vld [vmem:[%s0 + $0x28] sm:$0xff]
    %v24 = vld [vmem:[%s0 + $0x30] sm:$0xff]
    %v25 = vld [vmem:[%s0 + $0x38] sm:$0xff]
    %v26 = vld [vmem:[%s0 + $0x40] sm:$0xff]
    %v27 = vld [vmem:[%s0 + $0x48] sm:$0xff]
    %v28 = vld [vmem:[%s0 + $0x50] sm:$0xff]
    %v29 = vld [vmem:[%s0 + $0x58] sm:$0xff]
    %v30 = vld [vmem:[%s1] sm:$0x3f]
    %v31 = vld [vmem:[%s3] sm:$0xff]
    %v32 = vld [vmem:[%s3 + $0x8] sm:$0xff]
    %v33 = vld [vmem:[%s3 + $0x10] sm:$0xff]
    %34 = vrot.lane.b32.xlu0 %v18, 19
    %v35 = vpop.permute.xlu0 %34
    %36 = vrot.lane.b32.xlu0 %v24, 19
    %v37 = vpop.permute.xlu0 %36
    %38 = vrot.lane.b32.xlu0 %v19, 19
    %v39 = vpop.permute.xlu0 %38
    %40 = vrot.lane.b32.xlu0 %v25, 19
    %v41 = vpop.permute.xlu0 %40
    %42 = vrot.lane.b32.xlu0 %v20, 19
    %v43 = vpop.permute.xlu0 %42
    %44 = vrot.lane.b32.xlu0 %v26, 19
    %v45 = vpop.permute.xlu0 %44
    %46 = vrot.lane.b32.xlu0 %v21, 19
    %v47 = vpop.permute.xlu0 %46
    %48 = vrot.lane.b32.xlu0 %v27, 19
    %v49 = vpop.permute.xlu0 %48
    %50 = vrot.lane.b32.xlu0 %v22, 19
    %v51 = vpop.permute.xlu0 %50
    %52 = vrot.lane.b32.xlu0 %v28, 19
    %v53 = vpop.permute.xlu0 %52
    %54 = vrot.lane.b32.xlu0 %v23, 19
    %v55 = vpop.permute.xlu0 %54
    %56 = vrot.lane.b32.xlu0 %v29, 19
    %v57 = vpop.permute.xlu0 %56
    %v58 = vlaneseq
    %v59 = vand.u32 %v58, 127
    %vm60 = vcmp.lt.s32.totalorder %v59, 19
    %v61 = vsel %vm60, %v51, %v55
    %v62 = vsel %vm60, %v53, %v57
    %v63 = vsel %vm60, %v47, %v51
    %v64 = vsel %vm60, %v49, %v53
    %v65 = vsel %vm60, %v43, %v47
    %v66 = vsel %vm60, %v45, %v49
    %v67 = vsel %vm60, %v39, %v43
    %v68 = vsel %vm60, %v41, %v45
    %v69 = vsel %vm60, %v35, %v39
    %v70 = vsel %vm60, %v37, %v41
    %v71 = vsel %vm60, %v55, %v35
    %v72 = vsel %vm60, %v57, %v37
    %73 = vst [vmem:[#allocation2] sm:$0xff] %v71
    %74 = vst [vmem:[#allocation2 + $0x8] sm:$0xff] %v69
    %75 = vst [vmem:[#allocation2 + $0x10] sm:$0xff] %v67
    %76 = vst [vmem:[#allocation2 + $0x18] sm:$0xff] %v65
    %77 = vst [vmem:[#allocation2 + $0x20] sm:$0xff] %v63
    %78 = vst [vmem:[#allocation2 + $0x28] sm:$0xff] %v61
    %79 = vst [vmem:[#allocation2 + $0x30] sm:$0xff] %v72
    %80 = vst [vmem:[#allocation2 + $0x38] sm:$0xff] %v70
    %81 = vst [vmem:[#allocation2 + $0x40] sm:$0xff] %v68
    %82 = vst [vmem:[#allocation2 + $0x48] sm:$0xff] %v66
    %83 = vst [vmem:[#allocation2 + $0x50] sm:$0xff] %v64
    %84 = vst [vmem:[#allocation2 + $0x58] sm:$0xff] %v62
    %85 = vrot.lane.b32.xlu0 %v18, 18
    %v86 = vpop.permute.xlu0 %85
    %87 = vrot.lane.b32.xlu0 %v24, 18
    %v88 = vpop.permute.xlu0 %87
    %89 = vrot.lane.b32.xlu0 %v19, 18
    %v90 = vpop.permute.xlu0 %89
    %91 = vrot.lane.b32.xlu0 %v25, 18
    %v92 = vpop.permute.xlu0 %91
    %93 = vrot.lane.b32.xlu0 %v20, 18
    %v94 = vpop.permute.xlu0 %93
    %95 = vrot.lane.b32.xlu0 %v26, 18
    %v96 = vpop.permute.xlu0 %95
    %97 = vrot.lane.b32.xlu0 %v21, 18
    %v98 = vpop.permute.xlu0 %97
    %99 = vrot.lane.b32.xlu0 %v27, 18
    %v100 = vpop.permute.xlu0 %99
    %101 = vrot.lane.b32.xlu0 %v22, 18
    %v102 = vpop.permute.xlu0 %101
    %103 = vrot.lane.b32.xlu0 %v28, 18
    %v104 = vpop.permute.xlu0 %103
    %105 = vrot.lane.b32.xlu0 %v23, 18
    %v106 = vpop.permute.xlu0 %105
    %107 = vrot.lane.b32.xlu0 %v29, 18
    %v108 = vpop.permute.xlu0 %107
    %vm109 = vcmp.lt.s32.totalorder %v59, 18
    %v110 = vsel %vm109, %v102, %v106
    %v111 = vsel %vm109, %v104, %v108
    %v112 = vsel %vm109, %v98, %v102
    %v113 = vsel %vm109, %v100, %v104
    %v114 = vsel %vm109, %v94, %v98
    %v115 = vsel %vm109, %v96, %v100
    %v116 = vsel %vm109, %v90, %v94
    %v117 = vsel %vm109, %v92, %v96
    %v118 = vsel %vm109, %v86, %v90
    %v119 = vsel %vm109, %v88, %v92
    %v120 = vsel %vm109, %v106, %v86
    %v121 = vsel %vm109, %v108, %v88
    %122 = vst [vmem:[#allocation2 + $0x60] sm:$0xff] %v120
    %123 = vst [vmem:[#allocation2 + $0x68] sm:$0xff] %v118
    %124 = vst [vmem:[#allocation2 + $0x70] sm:$0xff] %v116
    %125 = vst [vmem:[#allocation2 + $0x78] sm:$0xff] %v114
    %126 = vst [vmem:[#allocation2 + $0x80] sm:$0xff] %v112
    %127 = vst [vmem:[#allocation2 + $0x88] sm:$0xff] %v110
    %128 = vst [vmem:[#allocation2 + $0x90] sm:$0xff] %v121
    %129 = vst [vmem:[#allocation2 + $0x98] sm:$0xff] %v119
    %130 = vst [vmem:[#allocation2 + $0xa0] sm:$0xff] %v117
    %131 = vst [vmem:[#allocation2 + $0xa8] sm:$0xff] %v115
    %132 = vst [vmem:[#allocation2 + $0xb0] sm:$0xff] %v113
    %133 = vst [vmem:[#allocation2 + $0xb8] sm:$0xff] %v111
    %134 = vrot.lane.b32.xlu0 %v18, 17
    %v135 = vpop.permute.xlu0 %134
    %136 = vrot.lane.b32.xlu0 %v24, 17
    %v137 = vpop.permute.xlu0 %136
    %138 = vrot.lane.b32.xlu0 %v19, 17
    %v139 = vpop.permute.xlu0 %138
    %140 = vrot.lane.b32.xlu0 %v25, 17
    %v141 = vpop.permute.xlu0 %140
    %142 = vrot.lane.b32.xlu0 %v20, 17
    %v143 = vpop.permute.xlu0 %142
    %144 = vrot.lane.b32.xlu0 %v26, 17
    %v145 = vpop.permute.xlu0 %144
    %146 = vrot.lane.b32.xlu0 %v21, 17
    %v147 = vpop.permute.xlu0 %146
    %148 = vrot.lane.b32.xlu0 %v27, 17
    %v149 = vpop.permute.xlu0 %148
    %150 = vrot.lane.b32.xlu0 %v22, 17
    %v151 = vpop.permute.xlu0 %150
    %152 = vrot.lane.b32.xlu0 %v28, 17
    %v153 = vpop.permute.xlu0 %152
    %154 = vrot.lane.b32.xlu0 %v23, 17
    %v155 = vpop.permute.xlu0 %154
    %156 = vrot.lane.b32.xlu0 %v29, 17
    %v157 = vpop.permute.xlu0 %156
    %vm158 = vcmp.lt.s32.totalorder %v59, 17
    %v159 = vsel %vm158, %v151, %v155
    %v160 = vsel %vm158, %v153, %v157
    %v161 = vsel %vm158, %v147, %v151
    %v162 = vsel %vm158, %v149, %v153
    %v163 = vsel %vm158, %v143, %v147
    %v164 = vsel %vm158, %v145, %v149
    %v165 = vsel %vm158, %v139, %v143
    %v166 = vsel %vm158, %v141, %v145
    %v167 = vsel %vm158, %v135, %v139
    %v168 = vsel %vm158, %v137, %v141
    %v169 = vsel %vm158, %v155, %v135
    %v170 = vsel %vm158, %v157, %v137
    %171 = vst [vmem:[#allocation2 + $0xc0] sm:$0xff] %v169
    %172 = vst [vmem:[#allocation2 + $0xc8] sm:$0xff] %v167
    %173 = vst [vmem:[#allocation2 + $0xd0] sm:$0xff] %v165
    %174 = vst [vmem:[#allocation2 + $0xd8] sm:$0xff] %v163
    %175 = vst [vmem:[#allocation2 + $0xe0] sm:$0xff] %v161
    %176 = vst [vmem:[#allocation2 + $0xe8] sm:$0xff] %v159
    %177 = vst [vmem:[#allocation2 + $0xf0] sm:$0xff] %v170
    %178 = vst [vmem:[#allocation2 + $0xf8] sm:$0xff] %v168
    %179 = vst [vmem:[#allocation2 + $0x100] sm:$0xff] %v166
    %180 = vst [vmem:[#allocation2 + $0x108] sm:$0xff] %v164
    %181 = vst [vmem:[#allocation2 + $0x110] sm:$0xff] %v162
    %182 = vst [vmem:[#allocation2 + $0x118] sm:$0xff] %v160
    %183 = vrot.lane.b32.xlu0 %v18, 1
    %v184 = vpop.permute.xlu0 %183
    %185 = vrot.lane.b32.xlu0 %v24, 1
    %v186 = vpop.permute.xlu0 %185
    %187 = vrot.lane.b32.xlu0 %v19, 1
    %v188 = vpop.permute.xlu0 %187
    %189 = vrot.lane.b32.xlu0 %v25, 1
    %v190 = vpop.permute.xlu0 %189
    %191 = vrot.lane.b32.xlu0 %v20, 1
    %v192 = vpop.permute.xlu0 %191
    %193 = vrot.lane.b32.xlu0 %v26, 1
    %v194 = vpop.permute.xlu0 %193
    %195 = vrot.lane.b32.xlu0 %v21, 1
    %v196 = vpop.permute.xlu0 %195
    %197 = vrot.lane.b32.xlu0 %v27, 1
    %v198 = vpop.permute.xlu0 %197
    %199 = vrot.lane.b32.xlu0 %v22, 1
    %v200 = vpop.permute.xlu0 %199
    %201 = vrot.lane.b32.xlu0 %v28, 1
    %v202 = vpop.permute.xlu0 %201
    %203 = vrot.lane.b32.xlu0 %v23, 1
    %v204 = vpop.permute.xlu0 %203
    %205 = vrot.lane.b32.xlu0 %v29, 1
    %v206 = vpop.permute.xlu0 %205
    %vm207 = vcmp.lt.s32.totalorder %v59, 1
    %v208 = vsel %vm207, %v200, %v204
    %v209 = vsel %vm207, %v202, %v206
    %v210 = vsel %vm207, %v196, %v200
    %v211 = vsel %vm207, %v198, %v202
    %v212 = vsel %vm207, %v192, %v196
    %v213 = vsel %vm207, %v194, %v198
    %v214 = vsel %vm207, %v188, %v192
    %v215 = vsel %vm207, %v190, %v194
    %v216 = vsel %vm207, %v184, %v188
    %v217 = vsel %vm207, %v186, %v190
    %v218 = vsel %vm207, %v204, %v184
    %v219 = vsel %vm207, %v206, %v186
    %220 = vst [vmem:[#allocation2 + $0x120] sm:$0xff] %v218
    %221 = vst [vmem:[#allocation2 + $0x128] sm:$0xff] %v216
    %222 = vst [vmem:[#allocation2 + $0x130] sm:$0xff] %v214
    %223 = vst [vmem:[#allocation2 + $0x138] sm:$0xff] %v212
    %224 = vst [vmem:[#allocation2 + $0x140] sm:$0xff] %v210
    %225 = vst [vmem:[#allocation2 + $0x148] sm:$0xff] %v208
    %226 = vst [vmem:[#allocation2 + $0x150] sm:$0xff] %v219
    %227 = vst [vmem:[#allocation2 + $0x158] sm:$0xff] %v217
    %228 = vst [vmem:[#allocation2 + $0x160] sm:$0xff] %v215
    %229 = vst [vmem:[#allocation2 + $0x168] sm:$0xff] %v213
    %230 = vst [vmem:[#allocation2 + $0x170] sm:$0xff] %v211
    %231 = vst [vmem:[#allocation2 + $0x178] sm:$0xff] %v209
    %232 = vst [vmem:[#allocation2 + $0x180] sm:$0xff] %v18
    %233 = vst [vmem:[#allocation2 + $0x188] sm:$0xff] %v19
    %234 = vst [vmem:[#allocation2 + $0x190] sm:$0xff] %v20
    %235 = vst [vmem:[#allocation2 + $0x198] sm:$0xff] %v21
    %236 = vst [vmem:[#allocation2 + $0x1a0] sm:$0xff] %v22
    %237 = vst [vmem:[#allocation2 + $0x1a8] sm:$0xff] %v23
    %238 = vst [vmem:[#allocation2 + $0x1b0] sm:$0xff] %v24
    %239 = vst [vmem:[#allocation2 + $0x1b8] sm:$0xff] %v25
    %240 = vst [vmem:[#allocation2 + $0x1c0] sm:$0xff] %v26
    %241 = vst [vmem:[#allocation2 + $0x1c8] sm:$0xff] %v27
    %242 = vst [vmem:[#allocation2 + $0x1d0] sm:$0xff] %v28
    %243 = vst [vmem:[#allocation2 + $0x1d8] sm:$0xff] %v29
    %244 = vrot.lane.b32.xlu0 %v18, 127
    %v245 = vpop.permute.xlu0 %244
    %246 = vrot.lane.b32.xlu0 %v24, 127
    %v247 = vpop.permute.xlu0 %246
    %248 = vrot.lane.b32.xlu0 %v19, 127
    %v249 = vpop.permute.xlu0 %248
    %250 = vrot.lane.b32.xlu0 %v25, 127
    %v251 = vpop.permute.xlu0 %250
    %252 = vrot.lane.b32.xlu0 %v20, 127
    %v253 = vpop.permute.xlu0 %252
    %254 = vrot.lane.b32.xlu0 %v26, 127
    %v255 = vpop.permute.xlu0 %254
    %256 = vrot.lane.b32.xlu0 %v21, 127
    %v257 = vpop.permute.xlu0 %256
    %258 = vrot.lane.b32.xlu0 %v27, 127
    %v259 = vpop.permute.xlu0 %258
    %260 = vrot.lane.b32.xlu0 %v22, 127
    %v261 = vpop.permute.xlu0 %260
    %262 = vrot.lane.b32.xlu0 %v28, 127
    %v263 = vpop.permute.xlu0 %262
    %264 = vrot.lane.b32.xlu0 %v23, 127
    %v265 = vpop.permute.xlu0 %264
    %266 = vrot.lane.b32.xlu0 %v29, 127
    %v267 = vpop.permute.xlu0 %266
    %vm268 = vcmp.lt.s32.totalorder %v59, 127
    %v269 = vsel %vm268, %v261, %v265
    %v270 = vsel %vm268, %v263, %v267
    %v271 = vsel %vm268, %v257, %v261
    %v272 = vsel %vm268, %v259, %v263
    %v273 = vsel %vm268, %v253, %v257
    %v274 = vsel %vm268, %v255, %v259
    %v275 = vsel %vm268, %v249, %v253
    %v276 = vsel %vm268, %v251, %v255
    %v277 = vsel %vm268, %v245, %v249
    %v278 = vsel %vm268, %v247, %v251
    %v279 = vsel %vm268, %v265, %v245
    %v280 = vsel %vm268, %v267, %v247
    %281 = vst [vmem:[#allocation2 + $0x1e0] sm:$0xff] %v277
    %282 = vst [vmem:[#allocation2 + $0x1e8] sm:$0xff] %v275
    %283 = vst [vmem:[#allocation2 + $0x1f0] sm:$0xff] %v273
    %284 = vst [vmem:[#allocation2 + $0x1f8] sm:$0xff] %v271
    %285 = vst [vmem:[#allocation2 + $0x200] sm:$0xff] %v269
    %286 = vst [vmem:[#allocation2 + $0x208] sm:$0xff] %v279
    %287 = vst [vmem:[#allocation2 + $0x210] sm:$0xff] %v278
    %288 = vst [vmem:[#allocation2 + $0x218] sm:$0xff] %v276
    %289 = vst [vmem:[#allocation2 + $0x220] sm:$0xff] %v274
    %290 = vst [vmem:[#allocation2 + $0x228] sm:$0xff] %v272
    %291 = vst [vmem:[#allocation2 + $0x230] sm:$0xff] %v270
    %292 = vst [vmem:[#allocation2 + $0x238] sm:$0xff] %v280
    %293 = vrot.lane.b32.xlu0 %v18, 111
    %v294 = vpop.permute.xlu0 %293
    %295 = vrot.lane.b32.xlu0 %v24, 111
    %v296 = vpop.permute.xlu0 %295
    %297 = vrot.lane.b32.xlu0 %v19, 111
    %v298 = vpop.permute.xlu0 %297
    %299 = vrot.lane.b32.xlu0 %v25, 111
    %v300 = vpop.permute.xlu0 %299
    %301 = vrot.lane.b32.xlu0 %v20, 111
    %v302 = vpop.permute.xlu0 %301
    %303 = vrot.lane.b32.xlu0 %v26, 111
    %v304 = vpop.permute.xlu0 %303
    %305 = vrot.lane.b32.xlu0 %v21, 111
    %v306 = vpop.permute.xlu0 %305
    %307 = vrot.lane.b32.xlu0 %v27, 111
    %v308 = vpop.permute.xlu0 %307
    %309 = vrot.lane.b32.xlu0 %v22, 111
    %v310 = vpop.permute.xlu0 %309
    %311 = vrot.lane.b32.xlu0 %v28, 111
    %v312 = vpop.permute.xlu0 %311
    %313 = vrot.lane.b32.xlu0 %v23, 111
    %v314 = vpop.permute.xlu0 %313
    %315 = vrot.lane.b32.xlu0 %v29, 111
    %v316 = vpop.permute.xlu0 %315
    %vm317 = vcmp.lt.s32.totalorder %v59, 111
    %v318 = vsel %vm317, %v310, %v314
    %v319 = vsel %vm317, %v312, %v316
    %v320 = vsel %vm317, %v306, %v310
    %v321 = vsel %vm317, %v308, %v312
    %v322 = vsel %vm317, %v302, %v306
    %v323 = vsel %vm317, %v304, %v308
    %v324 = vsel %vm317, %v298, %v302
    %v325 = vsel %vm317, %v300, %v304
    %v326 = vsel %vm317, %v294, %v298
    %v327 = vsel %vm317, %v296, %v300
    %v328 = vsel %vm317, %v314, %v294
    %v329 = vsel %vm317, %v316, %v296
    %330 = vst [vmem:[#allocation2 + $0x240] sm:$0xff] %v326
    %331 = vst [vmem:[#allocation2 + $0x248] sm:$0xff] %v324
    %332 = vst [vmem:[#allocation2 + $0x250] sm:$0xff] %v322
    %333 = vst [vmem:[#allocation2 + $0x258] sm:$0xff] %v320
    %334 = vst [vmem:[#allocation2 + $0x260] sm:$0xff] %v318
    %335 = vst [vmem:[#allocation2 + $0x268] sm:$0xff] %v328
    %336 = vst [vmem:[#allocation2 + $0x270] sm:$0xff] %v327
    %337 = vst [vmem:[#allocation2 + $0x278] sm:$0xff] %v325
    %338 = vst [vmem:[#allocation2 + $0x280] sm:$0xff] %v323
    %339 = vst [vmem:[#allocation2 + $0x288] sm:$0xff] %v321
    %340 = vst [vmem:[#allocation2 + $0x290] sm:$0xff] %v319
    %341 = vst [vmem:[#allocation2 + $0x298] sm:$0xff] %v329
    %342 = vrot.lane.b32.xlu0 %v18, 110
    %v343 = vpop.permute.xlu0 %342
    %344 = vrot.lane.b32.xlu0 %v24, 110
    %v345 = vpop.permute.xlu0 %344
    %346 = vrot.lane.b32.xlu0 %v19, 110
    %v347 = vpop.permute.xlu0 %346
    %348 = vrot.lane.b32.xlu0 %v25, 110
    %v349 = vpop.permute.xlu0 %348
    %350 = vrot.lane.b32.xlu0 %v20, 110
    %v351 = vpop.permute.xlu0 %350
    %352 = vrot.lane.b32.xlu0 %v26, 110
    %v353 = vpop.permute.xlu0 %352
    %354 = vrot.lane.b32.xlu0 %v21, 110
    %v355 = vpop.permute.xlu0 %354
    %356 = vrot.lane.b32.xlu0 %v27, 110
    %v357 = vpop.permute.xlu0 %356
    %358 = vrot.lane.b32.xlu0 %v22, 110
    %v359 = vpop.permute.xlu0 %358
    %360 = vrot.lane.b32.xlu0 %v28, 110
    %v361 = vpop.permute.xlu0 %360
    %362 = vrot.lane.b32.xlu0 %v23, 110
    %v363 = vpop.permute.xlu0 %362
    %364 = vrot.lane.b32.xlu0 %v29, 110
    %v365 = vpop.permute.xlu0 %364
    %vm366 = vcmp.lt.s32.totalorder %v59, 110
    %v367 = vsel %vm366, %v359, %v363
    %v368 = vsel %vm366, %v361, %v365
    %v369 = vsel %vm366, %v355, %v359
    %v370 = vsel %vm366, %v357, %v361
    %v371 = vsel %vm366, %v351, %v355
    %v372 = vsel %vm366, %v353, %v357
    %v373 = vsel %vm366, %v347, %v351
    %v374 = vsel %vm366, %v349, %v353
    %v375 = vsel %vm366, %v343, %v347
    %v376 = vsel %vm366, %v345, %v349
    %v377 = vsel %vm366, %v363, %v343
    %v378 = vsel %vm366, %v365, %v345
    %379 = vst [vmem:[#allocation2 + $0x2a0] sm:$0xff] %v375
    %380 = vst [vmem:[#allocation2 + $0x2a8] sm:$0xff] %v373
    %381 = vst [vmem:[#allocation2 + $0x2b0] sm:$0xff] %v371
    %382 = vst [vmem:[#allocation2 + $0x2b8] sm:$0xff] %v369
    %383 = vst [vmem:[#allocation2 + $0x2c0] sm:$0xff] %v367
    %384 = vst [vmem:[#allocation2 + $0x2c8] sm:$0xff] %v377
    %385 = vst [vmem:[#allocation2 + $0x2d0] sm:$0xff] %v376
    %386 = vst [vmem:[#allocation2 + $0x2d8] sm:$0xff] %v374
    %387 = vst [vmem:[#allocation2 + $0x2e0] sm:$0xff] %v372
    %388 = vst [vmem:[#allocation2 + $0x2e8] sm:$0xff] %v370
    %389 = vst [vmem:[#allocation2 + $0x2f0] sm:$0xff] %v368
    %390 = vst [vmem:[#allocation2 + $0x2f8] sm:$0xff] %v378
    %391 = vrot.lane.b32.xlu0 %v18, 109
    %v392 = vpop.permute.xlu0 %391
    %393 = vrot.lane.b32.xlu0 %v24, 109
    %v394 = vpop.permute.xlu0 %393
    %395 = vrot.lane.b32.xlu0 %v19, 109
    %v396 = vpop.permute.xlu0 %395
    %397 = vrot.lane.b32.xlu0 %v25, 109
    %v398 = vpop.permute.xlu0 %397
    %399 = vrot.lane.b32.xlu0 %v20, 109
    %v400 = vpop.permute.xlu0 %399
    %401 = vrot.lane.b32.xlu0 %v26, 109
    %v402 = vpop.permute.xlu0 %401
    %403 = vrot.lane.b32.xlu0 %v21, 109
    %v404 = vpop.permute.xlu0 %403
    %405 = vrot.lane.b32.xlu0 %v27, 109
    %v406 = vpop.permute.xlu0 %405
    %407 = vrot.lane.b32.xlu0 %v22, 109
    %v408 = vpop.permute.xlu0 %407
    %409 = vrot.lane.b32.xlu0 %v28, 109
    %v410 = vpop.permute.xlu0 %409
    %411 = vrot.lane.b32.xlu0 %v23, 109
    %v412 = vpop.permute.xlu0 %411
    %413 = vrot.lane.b32.xlu0 %v29, 109
    %v414 = vpop.permute.xlu0 %413
    %vm415 = vcmp.lt.s32.totalorder %v59, 109
    %v416 = vsel %vm415, %v408, %v412
    %v417 = vsel %vm415, %v410, %v414
    %v418 = vsel %vm415, %v404, %v408
    %v419 = vsel %vm415, %v406, %v410
    %v420 = vsel %vm415, %v400, %v404
    %v421 = vsel %vm415, %v402, %v406
    %v422 = vsel %vm415, %v396, %v400
    %v423 = vsel %vm415, %v398, %v402
    %v424 = vsel %vm415, %v392, %v396
    %v425 = vsel %vm415, %v394, %v398
    %v426 = vsel %vm415, %v412, %v392
    %v427 = vsel %vm415, %v414, %v394
    %428 = vst [vmem:[#allocation2 + $0x300] sm:$0xff] %v424
    %429 = vst [vmem:[#allocation2 + $0x308] sm:$0xff] %v422
    %430 = vst [vmem:[#allocation2 + $0x310] sm:$0xff] %v420
    %431 = vst [vmem:[#allocation2 + $0x318] sm:$0xff] %v418
    %432 = vst [vmem:[#allocation2 + $0x320] sm:$0xff] %v416
    %433 = vst [vmem:[#allocation2 + $0x328] sm:$0xff] %v426
    %434 = vst [vmem:[#allocation2 + $0x330] sm:$0xff] %v425
    %435 = vst [vmem:[#allocation2 + $0x338] sm:$0xff] %v423
    %436 = vst [vmem:[#allocation2 + $0x340] sm:$0xff] %v421
    %437 = vst [vmem:[#allocation2 + $0x348] sm:$0xff] %v419
    %438 = vst [vmem:[#allocation2 + $0x350] sm:$0xff] %v417
    %439 = vst [vmem:[#allocation2 + $0x358] sm:$0xff] %v427
    %v440 = vld [vmem:[%s2] sm:$0xff]
    %v441 = vld [vmem:[%s2 + $0x8] sm:$0xff]
    %v442 = vld [vmem:[#allocation2] sm:$0xff]
    %v443 = vld [vmem:[#allocation2 + $0x8] sm:$0xff]
    %v444 = vld [vmem:[#allocation2 + $0x10] sm:$0xff]
    %v445 = vld [vmem:[#allocation2 + $0x18] sm:$0xff]
    %v446 = vld [vmem:[#allocation2 + $0x20] sm:$0xff]
    %v447 = vld [vmem:[#allocation2 + $0x28] sm:$0xff]
    %v448 = vld [vmem:[#allocation2 + $0x30] sm:$0xff]
    %v449 = vld [vmem:[#allocation2 + $0x38] sm:$0xff]
    %v450 = vld [vmem:[#allocation2 + $0x40] sm:$0xff]
    %v451 = vld [vmem:[#allocation2 + $0x48] sm:$0xff]
    %v452 = vld [vmem:[#allocation2 + $0x50] sm:$0xff]
    %v453 = vld [vmem:[#allocation2 + $0x58] sm:$0xff]
    %v454 = vld [vmem:[#allocation2 + $0x60] sm:$0xff]
    %v455 = vld [vmem:[#allocation2 + $0x68] sm:$0xff]
    %v456 = vld [vmem:[#allocation2 + $0x70] sm:$0xff]
    %v457 = vld [vmem:[#allocation2 + $0x78] sm:$0xff]
    %v458 = vld [vmem:[#allocation2 + $0x80] sm:$0xff]
    %v459 = vld [vmem:[#allocation2 + $0x88] sm:$0xff]
    %v460 = vld [vmem:[#allocation2 + $0x90] sm:$0xff]
    %v461 = vld [vmem:[#allocation2 + $0x98] sm:$0xff]
    %v462 = vld [vmem:[#allocation2 + $0xa0] sm:$0xff]
    %v463 = vld [vmem:[#allocation2 + $0xa8] sm:$0xff]
    %v464 = vld [vmem:[#allocation2 + $0xb0] sm:$0xff]
    %v465 = vld [vmem:[#allocation2 + $0xb8] sm:$0xff]
    %v466 = vld [vmem:[#allocation2 + $0xc0] sm:$0xff]
    %v467 = vld [vmem:[#allocation2 + $0xc8] sm:$0xff]
    %v468 = vld [vmem:[#allocation2 + $0xd0] sm:$0xff]
    %v469 = vld [vmem:[#allocation2 + $0xd8] sm:$0xff]
    %v470 = vld [vmem:[#allocation2 + $0xe0] sm:$0xff]
    %v471 = vld [vmem:[#allocation2 + $0xe8] sm:$0xff]
    %v472 = vld [vmem:[#allocation2 + $0xf0] sm:$0xff]
    %v473 = vld [vmem:[#allocation2 + $0xf8] sm:$0xff]
    %v474 = vld [vmem:[#allocation2 + $0x100] sm:$0xff]
    %v475 = vld [vmem:[#allocation2 + $0x108] sm:$0xff]
    %v476 = vld [vmem:[#allocation2 + $0x110] sm:$0xff]
    %v477 = vld [vmem:[#allocation2 + $0x118] sm:$0xff]
    %v478 = vld [vmem:[#allocation2 + $0x120] sm:$0xff]
    %v479 = vld [vmem:[#allocation2 + $0x128] sm:$0xff]
    %v480 = vld [vmem:[#allocation2 + $0x130] sm:$0xff]
    %v481 = vld [vmem:[#allocation2 + $0x138] sm:$0xff]
    %v482 = vld [vmem:[#allocation2 + $0x140] sm:$0xff]
    %v483 = vld [vmem:[#allocation2 + $0x148] sm:$0xff]
    %v484 = vld [vmem:[#allocation2 + $0x150] sm:$0xff]
    %v485 = vld [vmem:[#allocation2 + $0x158] sm:$0xff]
    %v486 = vld [vmem:[#allocation2 + $0x160] sm:$0xff]
    %v487 = vld [vmem:[#allocation2 + $0x168] sm:$0xff]
    %v488 = vld [vmem:[#allocation2 + $0x170] sm:$0xff]
    %v489 = vld [vmem:[#allocation2 + $0x178] sm:$0xff]
    %v490 = vld [vmem:[#allocation2 + $0x180] sm:$0xff]
    %v491 = vld [vmem:[#allocation2 + $0x188] sm:$0xff]
    %v492 = vld [vmem:[#allocation2 + $0x190] sm:$0xff]
    %v493 = vld [vmem:[#allocation2 + $0x198] sm:$0xff]
    %v494 = vld [vmem:[#allocation2 + $0x1a0] sm:$0xff]
    %v495 = vld [vmem:[#allocation2 + $0x1a8] sm:$0xff]
    %v496 = vld [vmem:[#allocation2 + $0x1b0] sm:$0xff]
    %v497 = vld [vmem:[#allocation2 + $0x1b8] sm:$0xff]
    %v498 = vld [vmem:[#allocation2 + $0x1c0] sm:$0xff]
    %v499 = vld [vmem:[#allocation2 + $0x1c8] sm:$0xff]
    %v500 = vld [vmem:[#allocation2 + $0x1d0] sm:$0xff]
    %v501 = vld [vmem:[#allocation2 + $0x1d8] sm:$0xff]
    %v502 = vld [vmem:[#allocation2 + $0x1e0] sm:$0xff]
    %v503 = vld [vmem:[#allocation2 + $0x1e8] sm:$0xff]
    %v504 = vld [vmem:[#allocation2 + $0x1f0] sm:$0xff]
    %v505 = vld [vmem:[#allocation2 + $0x1f8] sm:$0xff]
    %v506 = vld [vmem:[#allocation2 + $0x200] sm:$0xff]
    %v507 = vld [vmem:[#allocation2 + $0x208] sm:$0xff]
    %v508 = vld [vmem:[#allocation2 + $0x210] sm:$0xff]
    %v509 = vld [vmem:[#allocation2 + $0x218] sm:$0xff]
    %v510 = vld [vmem:[#allocation2 + $0x220] sm:$0xff]
    %v511 = vld [vmem:[#allocation2 + $0x228] sm:$0xff]
    %v512 = vld [vmem:[#allocation2 + $0x230] sm:$0xff]
    %v513 = vld [vmem:[#allocation2 + $0x238] sm:$0xff]
    %v514 = vld [vmem:[#allocation2 + $0x240] sm:$0xff]
    %v515 = vld [vmem:[#allocation2 + $0x248] sm:$0xff]
    %v516 = vld [vmem:[#allocation2 + $0x250] sm:$0xff]
    %v517 = vld [vmem:[#allocation2 + $0x258] sm:$0xff]
    %v518 = vld [vmem:[#allocation2 + $0x260] sm:$0xff]
    %v519 = vld [vmem:[#allocation2 + $0x268] sm:$0xff]
    %v520 = vld [vmem:[#allocation2 + $0x270] sm:$0xff]
    %v521 = vld [vmem:[#allocation2 + $0x278] sm:$0xff]
    %v522 = vld [vmem:[#allocation2 + $0x280] sm:$0xff]
    %v523 = vld [vmem:[#allocation2 + $0x288] sm:$0xff]
    %v524 = vld [vmem:[#allocation2 + $0x290] sm:$0xff]
    %v525 = vld [vmem:[#allocation2 + $0x298] sm:$0xff]
    %v526 = vld [vmem:[#allocation2 + $0x2a0] sm:$0xff]
    %v527 = vld [vmem:[#allocation2 + $0x2a8] sm:$0xff]
    %v528 = vld [vmem:[#allocation2 + $0x2b0] sm:$0xff]
    %v529 = vld [vmem:[#allocation2 + $0x2b8] sm:$0xff]
    %v530 = vld [vmem:[#allocation2 + $0x2c0] sm:$0xff]
    %v531 = vld [vmem:[#allocation2 + $0x2c8] sm:$0xff]
    %v532 = vld [vmem:[#allocation2 + $0x2d0] sm:$0xff]
    %v533 = vld [vmem:[#allocation2 + $0x2d8] sm:$0xff]
    %v534 = vld [vmem:[#allocation2 + $0x2e0] sm:$0xff]
    %v535 = vld [vmem:[#allocation2 + $0x2e8] sm:$0xff]
    %v536 = vld [vmem:[#allocation2 + $0x2f0] sm:$0xff]
    %v537 = vld [vmem:[#allocation2 + $0x2f8] sm:$0xff]
    %v538 = vld [vmem:[#allocation2 + $0x300] sm:$0xff]
    %v539 = vld [vmem:[#allocation2 + $0x308] sm:$0xff]
    %v540 = vld [vmem:[#allocation2 + $0x310] sm:$0xff]
    %v541 = vld [vmem:[#allocation2 + $0x318] sm:$0xff]
    %v542 = vld [vmem:[#allocation2 + $0x320] sm:$0xff]
    %v543 = vld [vmem:[#allocation2 + $0x328] sm:$0xff]
    %v544 = vld [vmem:[#allocation2 + $0x330] sm:$0xff]
    %v545 = vld [vmem:[#allocation2 + $0x338] sm:$0xff]
    %v546 = vld [vmem:[#allocation2 + $0x340] sm:$0xff]
    %v547 = vld [vmem:[#allocation2 + $0x348] sm:$0xff]
    %v548 = vld [vmem:[#allocation2 + $0x350] sm:$0xff]
    %v549 = vld [vmem:[#allocation2 + $0x358] sm:$0xff]
    %551 = vset.pattern.permute.xlu0 0
    %552 = vperm.xlu0 %551, %v31
    %v553 = vpop.permute.xlu0 %552
    %vm555 = vcmask 130048
    %v557 = vsel %vm555, %v441, 0
    %559 = vmatprep.subr.mxu0 %v443
    %560 = vmatpush1.msra.mxu0 %v442
    %561 = vmatprep.subr.mxu0 %v449
    %562 = vmatpush1.msra.mxu0 %v448
    %563 = vmatprep.subr.mxu0 %v455
    %564 = vmatpush1.msra.mxu0 %v454
    %565 = vmatprep.subr.mxu0 %v461
    %566 = vmatpush1.msra.mxu0 %v460
    %567 = vmatprep.subr.mxu0 %v467
    %568 = vmatpush1.msra.mxu0 %v466
    %569 = vmatprep.subr.mxu0 %v473
    %570 = vmatpush1.msra.mxu0 %v472
    %571 = vmatprep.subr.mxu0 %v479
    %572 = vmatpush1.msra.mxu0 %v478
    %573 = vmatprep.subr.mxu0 %v485
    %574 = vmatpush1.msra.mxu0 %v484
    %575 = vmatprep.subr.mxu0 %v491
    %576 = vmatpush1.msra.mxu0 %v490
    %577 = vmatprep.subr.mxu0 %v497
    %578 = vmatpush1.msra.mxu0 %v496
    %579 = vmatprep.subr.mxu0 %v503
    %580 = vmatpush1.msra.mxu0 %v502
    %581 = vmatprep.subr.mxu0 %v509
    %582 = vmatpush1.msra.mxu0 %v508
    %583 = vmatprep.subr.mxu0 %v515
    %584 = vmatpush1.msra.mxu0 %v514
    %585 = vmatprep.subr.mxu0 %v521
    %586 = vmatpush1.msra.mxu0 %v520
    %587 = vmatprep.subr.mxu0 %v527
    %588 = vmatpush1.msra.mxu0 %v526
    %589 = vmatprep.subr.mxu0 %v533
    %590 = vmatpush1.msra.mxu0 %v532
    %591 = vmatprep.subr.mxu0 %v539
    %592 = vmatpush1.msra.mxu0 %v538
    %593 = vmatprep.subr.mxu0 %v545
    %594 = vmatpush1.msra.mxu0 %v544
    %595 = vmatprep.subr.mxu0 0.0
    %596 = vmatpush1.msra.mxu0 0.0
    %597 = vmatprep.subr.mxu0 0.0
    %598 = vmatpush1.msra.mxu0 0.0
    %599 = vmatprep.subr.mxu0 0.0
    %600 = vmatpush1.msra.mxu0 0.0
    %601 = vmatprep.subr.mxu0 0.0
    %602 = vmatpush1.msra.mxu0 0.0
    %603 = vmatprep.subr.mxu0 0.0
    %604 = vmatpush1.msra.mxu0 0.0
    %605 = vmatprep.subr.mxu0 0.0
    %606 = vmatpush1.msra.mxu0 0.0
    %607 = vmatprep.subr.mxu0 0.0
    %608 = vmatpush1.msra.mxu0 0.0
    %609 = vmatprep.subr.mxu0 0.0
    %610 = vmatpush1.msra.mxu0 0.0
    %611 = vmatprep.subr.mxu0 0.0
    %612 = vmatpush1.msra.mxu0 0.0
    %613 = vmatprep.subr.mxu0 0.0
    %614 = vmatpush1.msra.mxu0 0.0
    %615 = vmatprep.subr.mxu0 0.0
    %616 = vmatpush1.msra.mxu0 0.0
    %617 = vmatprep.subr.mxu0 0.0
    %618 = vmatpush1.msra.mxu0 0.0
    %619 = vmatprep.subr.mxu0 0.0
    %620 = vmatpush1.msra.mxu0 0.0
    %621 = vmatprep.subr.mxu0 0.0
    %622 = vmatpush1.msra.mxu0 0.0
    %623 = vmatprep.mubr.f32.mxu0 %v557
    %624 = vmatmul.mubr.f32.gmra.mrb[0].mxu0 %v440
    %v625 = vpop.f32.mrb[0].mxu0
    %v626 = vadd.f32 %v553, %v625
    %v627 = vpop.f32.mrb[0].mxu0
    %v628 = vadd.f32 %v553, %v627
    %629 = vdwg.mxu0
    %630 = vmatprep.subr.mxu0 %v445
    %631 = vmatpush1.msra.mxu0 %v444
    %632 = vmatprep.subr.mxu0 %v451
    %633 = vmatpush1.msra.mxu0 %v450
    %634 = vmatprep.subr.mxu0 %v457
    %635 = vmatpush1.msra.mxu0 %v456
    %636 = vmatprep.subr.mxu0 %v463
    %637 = vmatpush1.msra.mxu0 %v462
    %638 = vmatprep.subr.mxu0 %v469
    %639 = vmatpush1.msra.mxu0 %v468
    %640 = vmatprep.subr.mxu0 %v475
    %641 = vmatpush1.msra.mxu0 %v474
    %642 = vmatprep.subr.mxu0 %v481
    %643 = vmatpush1.msra.mxu0 %v480
    %644 = vmatprep.subr.mxu0 %v487
    %645 = vmatpush1.msra.mxu0 %v486
    %646 = vmatprep.subr.mxu0 %v493
    %647 = vmatpush1.msra.mxu0 %v492
    %648 = vmatprep.subr.mxu0 %v499
    %649 = vmatpush1.msra.mxu0 %v498
    %650 = vmatprep.subr.mxu0 %v505
    %651 = vmatpush1.msra.mxu0 %v504
    %652 = vmatprep.subr.mxu0 %v511
    %653 = vmatpush1.msra.mxu0 %v510
    %654 = vmatprep.subr.mxu0 %v517
    %655 = vmatpush1.msra.mxu0 %v516
    %656 = vmatprep.subr.mxu0 %v523
    %657 = vmatpush1.msra.mxu0 %v522
    %658 = vmatprep.subr.mxu0 %v529
    %659 = vmatpush1.msra.mxu0 %v528
    %660 = vmatprep.subr.mxu0 %v535
    %661 = vmatpush1.msra.mxu0 %v534
    %662 = vmatprep.subr.mxu0 %v541
    %663 = vmatpush1.msra.mxu0 %v540
    %664 = vmatprep.subr.mxu0 %v547
    %665 = vmatpush1.msra.mxu0 %v546
    %666 = vmatprep.subr.mxu0 0.0
    %667 = vmatpush1.msra.mxu0 0.0
    %668 = vmatprep.subr.mxu0 0.0
    %669 = vmatpush1.msra.mxu0 0.0
    %670 = vmatprep.subr.mxu0 0.0
    %671 = vmatpush1.msra.mxu0 0.0
    %672 = vmatprep.subr.mxu0 0.0
    %673 = vmatpush1.msra.mxu0 0.0
    %674 = vmatprep.subr.mxu0 0.0
    %675 = vmatpush1.msra.mxu0 0.0
    %676 = vmatprep.subr.mxu0 0.0
    %677 = vmatpush1.msra.mxu0 0.0
    %678 = vmatprep.subr.mxu0 0.0
    %679 = vmatpush1.msra.mxu0 0.0
    %680 = vmatprep.subr.mxu0 0.0
    %681 = vmatpush1.msra.mxu0 0.0
    %682 = vmatprep.subr.mxu0 0.0
    %683 = vmatpush1.msra.mxu0 0.0
    %684 = vmatprep.subr.mxu0 0.0
    %685 = vmatpush1.msra.mxu0 0.0
    %686 = vmatprep.subr.mxu0 0.0
    %687 = vmatpush1.msra.mxu0 0.0
    %688 = vmatprep.subr.mxu0 0.0
    %689 = vmatpush1.msra.mxu0 0.0
    %690 = vmatprep.subr.mxu0 0.0
    %691 = vmatpush1.msra.mxu0 0.0
    %692 = vmatprep.subr.mxu0 0.0
    %693 = vmatpush1.msra.mxu0 0.0
    %694 = vmatprep.mubr.f32.mxu0 %v557
    %695 = vmatmul.mubr.f32.gmra.mrb[0].mxu0 %v440
    %v696 = vpop.f32.mrb[0].mxu0
    %v697 = vadd.f32 %v553, %v696
    %v698 = vpop.f32.mrb[0].mxu0
    %v699 = vadd.f32 %v553, %v698
    %700 = vdwg.mxu0
    %701 = vmatprep.subr.mxu0 %v447
    %702 = vmatpush1.msra.mxu0 %v446
    %703 = vmatprep.subr.mxu0 %v453
    %704 = vmatpush1.msra.mxu0 %v452
    %705 = vmatprep.subr.mxu0 %v459
    %706 = vmatpush1.msra.mxu0 %v458
    %707 = vmatprep.subr.mxu0 %v465
    %708 = vmatpush1.msra.mxu0 %v464
    %709 = vmatprep.subr.mxu0 %v471
    %710 = vmatpush1.msra.mxu0 %v470
    %711 = vmatprep.subr.mxu0 %v477
    %712 = vmatpush1.msra.mxu0 %v476
    %713 = vmatprep.subr.mxu0 %v483
    %714 = vmatpush1.msra.mxu0 %v482
    %715 = vmatprep.subr.mxu0 %v489
    %716 = vmatpush1.msra.mxu0 %v488
    %717 = vmatprep.subr.mxu0 %v495
    %718 = vmatpush1.msra.mxu0 %v494
    %719 = vmatprep.subr.mxu0 %v501
    %720 = vmatpush1.msra.mxu0 %v500
    %721 = vmatprep.subr.mxu0 %v507
    %722 = vmatpush1.msra.mxu0 %v506
    %723 = vmatprep.subr.mxu0 %v513
    %724 = vmatpush1.msra.mxu0 %v512
    %725 = vmatprep.subr.mxu0 %v519
    %726 = vmatpush1.msra.mxu0 %v518
    %727 = vmatprep.subr.mxu0 %v525
    %728 = vmatpush1.msra.mxu0 %v524
    %729 = vmatprep.subr.mxu0 %v531
    %730 = vmatpush1.msra.mxu0 %v530
    %731 = vmatprep.subr.mxu0 %v537
    %732 = vmatpush1.msra.mxu0 %v536
    %733 = vmatprep.subr.mxu0 %v543
    %734 = vmatpush1.msra.mxu0 %v542
    %735 = vmatprep.subr.mxu0 %v549
    %736 = vmatpush1.msra.mxu0 %v548
    %737 = vmatprep.subr.mxu0 0.0
    %738 = vmatpush1.msra.mxu0 0.0
    %739 = vmatprep.subr.mxu0 0.0
    %740 = vmatpush1.msra.mxu0 0.0
    %741 = vmatprep.subr.mxu0 0.0
    %742 = vmatpush1.msra.mxu0 0.0
    %743 = vmatprep.subr.mxu0 0.0
    %744 = vmatpush1.msra.mxu0 0.0
    %745 = vmatprep.subr.mxu0 0.0
    %746 = vmatpush1.msra.mxu0 0.0
    %747 = vmatprep.subr.mxu0 0.0
    %748 = vmatpush1.msra.mxu0 0.0
    %749 = vmatprep.subr.mxu0 0.0
    %750 = vmatpush1.msra.mxu0 0.0
    %751 = vmatprep.subr.mxu0 0.0
    %752 = vmatpush1.msra.mxu0 0.0
    %753 = vmatprep.subr.mxu0 0.0
    %754 = vmatpush1.msra.mxu0 0.0
    %755 = vmatprep.subr.mxu0 0.0
    %756 = vmatpush1.msra.mxu0 0.0
    %757 = vmatprep.subr.mxu0 0.0
    %758 = vmatpush1.msra.mxu0 0.0
    %759 = vmatprep.subr.mxu0 0.0
    %760 = vmatpush1.msra.mxu0 0.0
    %761 = vmatprep.subr.mxu0 0.0
    %762 = vmatpush1.msra.mxu0 0.0
    %763 = vmatprep.subr.mxu0 0.0
    %764 = vmatpush1.msra.mxu0 0.0
    %765 = vmatprep.mubr.f32.mxu0 %v557
    %766 = vmatmul.mubr.f32.gmra.mrb[0].mxu0 %v440
    %v767 = vpop.f32.mrb[0].mxu0
    %v768 = vadd.f32 %v553, %v767
    %v769 = vpop.f32.mrb[0].mxu0
    %v770 = vadd.f32 %v553, %v769
    %771 = vdwg.mxu0
    %772 = vrot.lane.b32.xlu0 %v626, 127
    %v773 = vpop.permute.xlu0 %772
    %774 = vrot.lane.b32.xlu0 %v628, 127
    %v775 = vpop.permute.xlu0 %774
    %776 = vrot.lane.b32.xlu0 %v697, 127
    %v777 = vpop.permute.xlu0 %776
    %778 = vrot.lane.b32.xlu0 %v699, 127
    %v779 = vpop.permute.xlu0 %778
    %780 = vrot.lane.b32.xlu0 %v768, 127
    %v781 = vpop.permute.xlu0 %780
    %782 = vrot.lane.b32.xlu0 %v770, 127
    %v783 = vpop.permute.xlu0 %782
    %v784 = vsel %vm268, %v781, %v783
    %v785 = vsel %vm268, %v779, %v781
    %v786 = vsel %vm268, %v777, %v779
    %v787 = vsel %vm268, %v775, %v777
    %v788 = vsel %vm268, %v773, %v775
    %v789 = vsel %vm268, %v783, %v773
    %v790 = vmax.f32 %v626, %v788
    %v791 = vmax.f32 %v628, %v787
    %v792 = vmax.f32 %v697, %v786
    %v793 = vmax.f32 %v699, %v785
    %v794 = vmax.f32 %v768, %v784
    %v795 = vmax.f32 %v770, %v789
    %796 = vrot.lane.b32.xlu0 %v626, 110
    %v797 = vpop.permute.xlu0 %796
    %798 = vrot.lane.b32.xlu0 %v628, 110
    %v799 = vpop.permute.xlu0 %798
    %800 = vrot.lane.b32.xlu0 %v697, 110
    %v801 = vpop.permute.xlu0 %800
    %802 = vrot.lane.b32.xlu0 %v699, 110
    %v803 = vpop.permute.xlu0 %802
    %804 = vrot.lane.b32.xlu0 %v768, 110
    %v805 = vpop.permute.xlu0 %804
    %806 = vrot.lane.b32.xlu0 %v770, 110
    %v807 = vpop.permute.xlu0 %806
    %v808 = vsel %vm366, %v805, %v807
    %v809 = vsel %vm366, %v803, %v805
    %v810 = vsel %vm366, %v801, %v803
    %v811 = vsel %vm366, %v799, %v801
    %v812 = vsel %vm366, %v797, %v799
    %v813 = vsel %vm366, %v807, %v797
    %v814 = vmax.f32 %v790, %v812
    %v815 = vmax.f32 %v791, %v811
    %v816 = vmax.f32 %v792, %v810
    %v817 = vmax.f32 %v793, %v809
    %v818 = vmax.f32 %v794, %v808
    %v819 = vmax.f32 %v795, %v813
    %820 = vrot.lane.b32.xlu0 %v626, 109
    %v821 = vpop.permute.xlu0 %820
    %822 = vrot.lane.b32.xlu0 %v628, 109
    %v823 = vpop.permute.xlu0 %822
    %824 = vrot.lane.b32.xlu0 %v697, 109
    %v825 = vpop.permute.xlu0 %824
    %826 = vrot.lane.b32.xlu0 %v699, 109
    %v827 = vpop.permute.xlu0 %826
    %828 = vrot.lane.b32.xlu0 %v768, 109
    %v829 = vpop.permute.xlu0 %828
    %830 = vrot.lane.b32.xlu0 %v770, 109
    %v831 = vpop.permute.xlu0 %830
    %v832 = vsel %vm415, %v829, %v831
    %v833 = vsel %vm415, %v827, %v829
    %v834 = vsel %vm415, %v825, %v827
    %v835 = vsel %vm415, %v823, %v825
    %v836 = vsel %vm415, %v821, %v823
    %v837 = vsel %vm415, %v831, %v821
    %v838 = vmax.f32 %v814, %v836
    %v839 = vmax.f32 %v815, %v835
    %v840 = vmax.f32 %v816, %v834
    %v841 = vmax.f32 %v817, %v833
    %v842 = vmax.f32 %v818, %v832
    %v843 = vmax.f32 %v819, %v837
    %v845 = vlaneseq
    %v846 = vshrl.u32 %v845, 7
    %v847 = vsub.s32 0, %v846
    %v848 = vrot.slane %v30, %v847
    %v849 = vlaneseq
    %v850 = vshrl.u32 %v849, 7
    %v851 = vsub.s32 1, %v850
    %v852 = vrot.slane %v30, %v851
    %v853 = vlaneseq
    %v854 = vshrl.u32 %v853, 7
    %v855 = vsub.s32 2, %v854
    %v856 = vrot.slane %v30, %v855
    %v857 = vlaneseq
    %v858 = vshrl.u32 %v857, 7
    %v859 = vsub.s32 3, %v858
    %v860 = vrot.slane %v30, %v859
    %v861 = vlaneseq
    %v862 = vshrl.u32 %v861, 7
    %v863 = vsub.s32 4, %v862
    %v864 = vrot.slane %v30, %v863
    %v865 = vlaneseq
    %v866 = vshrl.u32 %v865, 7
    %v867 = vsub.s32 5, %v866
    %v868 = vrot.slane %v30, %v867
    %v875 = vmul.f32 %v838, %v848
    %v876 = vmul.f32 %v839, %v852
    %v877 = vmul.f32 %v840, %v856
    %v878 = vmul.f32 %v841, %v860
    %v879 = vmul.f32 %v842, %v864
    %v880 = vmul.f32 %v843, %v868
    %v881 = vadd.f32 %v875, %v876
    %v882 = vadd.f32 %v881, %v877
    %v883 = vadd.f32 %v882, %v878
    %v884 = vadd.f32 %v883, %v879
    %v885 = vadd.f32 %v884, %v880
    %886 = vadd.xlane.f32.xlu0 %v885
    %v887 = vpop.xlane.xlu0 %886
    %v888 = vmul.f32 %v875, %v838
    %v889 = vmul.f32 %v876, %v839
    %v890 = vmul.f32 %v877, %v840
    %v891 = vmul.f32 %v878, %v841
    %v892 = vmul.f32 %v879, %v842
    %v893 = vmul.f32 %v880, %v843
    %v894 = vadd.f32 %v888, %v889
    %v895 = vadd.f32 %v894, %v890
    %v896 = vadd.f32 %v895, %v891
    %v897 = vadd.f32 %v896, %v892
    %v898 = vadd.f32 %v897, %v893
    %899 = vadd.xlane.f32.xlu0 %v898
    %v900 = vpop.xlane.xlu0 %899
    %v901 = vrcp.pop 128.0
    %v902 = vmul.f32 %v887, %v901
    %v903 = vmul.f32 %v900, %v901
    %v904 = vmul.f32 %v902, %v902
    %v905 = vsub.f32 %v903, %v904
    %v906 = vmax.f32 %v905, 0.0
    %v907 = vsub.f32 %v838, %v902
    %v908 = vsub.f32 %v839, %v902
    %v909 = vsub.f32 %v840, %v902
    %v910 = vsub.f32 %v841, %v902
    %v911 = vsub.f32 %v842, %v902
    %v912 = vsub.f32 %v843, %v902
    %v913 = vadd.f32 %v906, 1e-05
    %v914 = vrsqrt.pop %v913
    %v915 = vmul.f32 %v907, %v914
    %v916 = vmul.f32 %v908, %v914
    %v917 = vmul.f32 %v909, %v914
    %v918 = vmul.f32 %v910, %v914
    %v919 = vmul.f32 %v911, %v914
    %v920 = vmul.f32 %v912, %v914
    %922 = vset.pattern.permute.xlu0 0
    %923 = vperm.xlu0 %922, %v32
    %v924 = vpop.permute.xlu0 %923
    %v926 = vmul.f32 %v924, %v915
    %v927 = vmul.f32 %v924, %v916
    %v928 = vmul.f32 %v924, %v917
    %v929 = vmul.f32 %v924, %v918
    %v930 = vmul.f32 %v924, %v919
    %v931 = vmul.f32 %v924, %v920
    %933 = vset.pattern.permute.xlu0 0
    %934 = vperm.xlu0 %933, %v33
    %v935 = vpop.permute.xlu0 %934
    %v937 = vadd.f32 %v926, %v935
    %v938 = vadd.f32 %v927, %v935
    %v939 = vadd.f32 %v928, %v935
    %v940 = vadd.f32 %v929, %v935
    %v941 = vadd.f32 %v930, %v935
    %v942 = vadd.f32 %v931, %v935
    %v943 = vmul.f32 %v937, 0.5
    %v944 = vmul.f32 %v938, 0.5
    %v945 = vmul.f32 %v939, 0.5
    %v946 = vmul.f32 %v940, 0.5
    %v947 = vmul.f32 %v941, 0.5
    %v948 = vmul.f32 %v942, 0.5
    %v949 = vtanh.pop %v943
    %v950 = vtanh.pop %v944
    %v951 = vtanh.pop %v945
    %v952 = vtanh.pop %v946
    %v953 = vtanh.pop %v947
    %v954 = vtanh.pop %v948
    %v955 = vmul.f32 %v949, 0.5
    %v956 = vmul.f32 %v950, 0.5
    %v957 = vmul.f32 %v951, 0.5
    %v958 = vmul.f32 %v952, 0.5
    %v959 = vmul.f32 %v953, 0.5
    %v960 = vmul.f32 %v954, 0.5
    %v961 = vadd.f32 %v955, 0.5
    %v962 = vadd.f32 %v956, 0.5
    %v963 = vadd.f32 %v957, 0.5
    %v964 = vadd.f32 %v958, 0.5
    %v965 = vadd.f32 %v959, 0.5
    %v966 = vadd.f32 %v960, 0.5
    %v973 = vrot.slane %v961, 4
    %v974 = vrot.slane %v962, 4
    %v975 = vrot.slane %v963, 4
    %v976 = vrot.slane %v964, 4
    %v977 = vrot.slane %v965, 4
    %v978 = vrot.slane %v966, 4
    %v985 = vsub.f32 %v961, %v973
    %v986 = vsub.f32 %v962, %v974
    %v987 = vsub.f32 %v963, %v975
    %v988 = vsub.f32 %v964, %v976
    %v989 = vsub.f32 %v965, %v977
    %v990 = vsub.f32 %v966, %v978
    %v991 = vand.u32 2147483647, %v985
    %v992 = vand.u32 2147483647, %v986
    %v993 = vand.u32 2147483647, %v987
    %v994 = vand.u32 2147483647, %v988
    %v995 = vand.u32 2147483647, %v989
    %v996 = vand.u32 2147483647, %v990
    %vm997 = vcmp.lt.f32.partialorder %v991, 1.0
    %vm998 = vcmp.lt.f32.partialorder %v992, 1.0
    %vm999 = vcmp.lt.f32.partialorder %v993, 1.0
    %vm1000 = vcmp.lt.f32.partialorder %v994, 1.0
    %vm1001 = vcmp.lt.f32.partialorder %v995, 1.0
    %vm1002 = vcmp.lt.f32.partialorder %v996, 1.0
    %v1003 = vmul.f32 %v985, 0.5
    %v1004 = vmul.f32 %v986, 0.5
    %v1005 = vmul.f32 %v987, 0.5
    %v1006 = vmul.f32 %v988, 0.5
    %v1007 = vmul.f32 %v989, 0.5
    %v1008 = vmul.f32 %v990, 0.5
    %v1009 = vmul.f32 %v1003, %v985
    %v1010 = vmul.f32 %v1004, %v986
    %v1011 = vmul.f32 %v1005, %v987
    %v1012 = vmul.f32 %v1006, %v988
    %v1013 = vmul.f32 %v1007, %v989
    %v1014 = vmul.f32 %v1008, %v990
    %v1015 = vsub.f32 %v991, 0.5
    %v1016 = vsub.f32 %v992, 0.5
    %v1017 = vsub.f32 %v993, 0.5
    %v1018 = vsub.f32 %v994, 0.5
    %v1019 = vsub.f32 %v995, 0.5
    %v1020 = vsub.f32 %v996, 0.5
    %v1021 = vsel %vm997, %v1009, %v1015
    %v1022 = vsel %vm998, %v1010, %v1016
    %v1023 = vsel %vm999, %v1011, %v1017
    %v1024 = vsel %vm1000, %v1012, %v1018
    %v1025 = vsel %vm1001, %v1013, %v1019
    %v1026 = vsel %vm1002, %v1014, %v1020
    %v1027 = vmul.f32 %v1021, %v848
    %v1028 = vmul.f32 %v1022, %v852
    %v1029 = vmul.f32 %v1023, %v856
    %v1030 = vmul.f32 %v1024, %v860
    %v1031 = vmul.f32 %v1025, %v864
    %v1032 = vmul.f32 %v1026, %v868
    %vm1033 = vcmask 1043456
    %v1034 = vsel %vm1033, %v1027, 0.0
    %v1035 = vsel %vm1033, %v1028, 0.0
    %v1036 = vadd.f32 %v1034, %v1035
    %v1037 = vsel %vm1033, %v1029, 0.0
    %v1038 = vadd.f32 %v1036, %v1037
    %v1039 = vsel %vm1033, %v1030, 0.0
    %v1040 = vadd.f32 %v1038, %v1039
    %v1041 = vsel %vm1033, %v1031, 0.0
    %v1042 = vadd.f32 %v1040, %v1041
    %v1043 = vsel %vm1033, %v1032, 0.0
    %v1044 = vadd.f32 %v1042, %v1043
    %1045 = vadd.xlane.f32.xlu0 %v1044
    %v1046 = vpop.xlane.xlu0 %1045
    %v1047 = vrot.slane %v1046, 4
    %v1048 = vadd.f32 %v1046, %v1047
    %v1049 = vrot.slane %v1048, 2
    %v1050 = vadd.f32 %v1048, %v1049
    %v1051 = vrot.slane %v1050, 1
    %v1052 = vadd.f32 %v1050, %v1051
    %s1053 = vtos %v1052
    %v1054 = vrcp.pop 512.0
    %s1055 = vtos %v1054
    %s1056 = smul.f32 %s1053, %s1055
    %s1057 = scalar_lea.smem [#allocation3], 0
    %1058 = sst [smem:[%s1057]] %s1056
    // Predicated region
    $region18: #{at_loss.1} parent=1 // pred_check
      _
    $region19: #{at_loss.1} parent=1 // pred_check_branch
      %1060 = sbr.rel (0) target = $region21
    $region20: #{at_loss.1} parent=1 // pred_region
      %s1062 = ssub.s32 16, 16
      %1063 = vsyncadd [#allocation4], %s1062
      %1066 = dma.smem_to_hbm [#allocation3], 16, %s4, [#allocation4]
    $region21: #{at_loss.1} parent=1 // pred_fallthru
      _
    // Predicated region
    $region22: #{at_loss.1} parent=1 // pred_check
      _
    $region23: #{at_loss.1} parent=1 // pred_check_branch
      %1068 = sbr.rel (0) target = $region25
    $region24: #{at_loss.1} parent=1 // pred_region
      %1069 = dma.done [#allocation4], 16
    $region25: #{at_loss.1} parent=1 // pred_fallthru
      _
    %1070 = sfence
    %1071 = vsyncpa [#allocation4], 1

</llo_original>
